<compile_context>
chip_gen: v5e
topology: v5e:2x2
jax: 0.10.0
libtpu: 0.0.40
codegen_flags: <defaults>
</compile_context>

<pallas_src>
import functools
import math

import jax
import jax.numpy as jnp
import numpy as np
from jax.experimental import pallas as pl
from jax.experimental.pallas import tpu as pltpu

EPS = 1e-5  # torch.nn.LayerNorm default


def _layer_norm(z, gamma, beta):
    """LayerNorm over the last dim (biased variance, like torch)."""
    mean = jnp.mean(z, axis=-1, keepdims=True)
    var = jnp.mean((z - mean) ** 2, axis=-1, keepdims=True)
    return (z - mean) * jax.lax.rsqrt(var + EPS) * gamma + beta


def _round_up(n, m):
    return ((n + m - 1) // m) * m


# -----------------------------------------------------------------------------
# Pass 1: accumulate the Gram statistic  S = x^T x  (E, E) over batch tiles.
# Grid = (nsplit, tiles_per_split); leading axis is "parallel" (dual-TC on v7x),
# each split owns its own (1, E, E) resident accumulator block.
# -----------------------------------------------------------------------------
def gram_kernel(x_ref, s_ref):
    @pl.when(pl.program_id(1) == 0)
    def _():
        s_ref[...] = jnp.zeros_like(s_ref)

    x = x_ref[...]                                            # (TB, E) matmul dtype
    dn = (((0,), (0,)), ((), ()))                             # contract tile rows
    acc = jax.lax.dot_general(x, x, dn, preferred_element_type=jnp.float32)
    s_ref[...] += acc[None, :, :]                             # (1, E, E)


# -----------------------------------------------------------------------------
# Pass 2: per-batch-tile transformer block.  Attention is ONE matmul x @ W_attn.
# -----------------------------------------------------------------------------
def self_block_kernel(x_ref, wattn_ref, w1_ref, w2_ref,
                      g1_ref, b1_ref, g2_ref, b2_ref, out_ref):
    x_mm = x_ref[...]                                         # (TB, E) matmul dtype
    x = x_mm.astype(jnp.float32)

    # MultiHeadAttention (softmax-free), with Wq @ Mbig @ Wo pre-folded.
    attn = jnp.dot(x_mm, wattn_ref[...], preferred_element_type=jnp.float32)

    # AddNorm 1 (dropout == identity in eval mode), f32 math.
    y = _layer_norm(attn + x, g1_ref[...], b1_ref[...])

    # FFN: Linear(E, 2E) -> ReLU -> Linear(2E, E), bias=False; bf16 MXU inputs.
    h1 = jnp.maximum(
        jnp.dot(y.astype(w1_ref.dtype), w1_ref[...],
                preferred_element_type=jnp.float32), 0.0)
    ffn = jnp.dot(h1.astype(w2_ref.dtype), w2_ref[...],
                  preferred_element_type=jnp.float32)

    # AddNorm 2
    out_ref[...] = _layer_norm(ffn + y, g2_ref[...], b2_ref[...]).astype(out_ref.dtype)


def _vmem_budget_bytes():
    cap = 128 << 20
    try:
        cap = int(getattr(pltpu.get_tpu_info(), "vmem_capacity_bytes", cap))
    except Exception:
        pass
    return int(cap * 0.75)          # never request the whole physical VMEM


def self_block(x, params, num_heads, *, batch_tile=512, matmul_dtype=jnp.bfloat16):
    B, E = x.shape
    assert E % num_heads == 0
    head_dim = E // num_heads
    f32 = jnp.float32
    mm_bytes = jnp.dtype(matmul_dtype).itemsize
    budget = _vmem_budget_bytes()

    # ---- batch-tile selection (multiple of 8 sublanes, bounded by VMEM) ----
    batch_tile = max(8, min(int(batch_tile), _round_up(B, 8)))
    batch_tile = _round_up(batch_tile, 8)

    def pass2_need(tb):
        tile_in = tb * E * mm_bytes            # double-buffered x tile
        tile_out = tb * E * 4                  # double-buffered f32 out tile
        weights = (E * E + 4 * E * E) * mm_bytes + 4 * E * 4   # W_attn,w1,w2,g/b
        temps = 8 * tb * E * 4                 # f32 intermediates headroom
        return 2 * tile_in + 2 * tile_out + weights + temps + (16 << 20)

    while batch_tile > 128 and pass2_need(batch_tile) > budget:
        batch_tile //= 2

    Bp = _round_up(B, batch_tile)
    nt = Bp // batch_tile
    nsplit = 2 if (nt >= 2 and nt % 2 == 0) else 1    # dual-TC split for pass 1
    nt_in = nt // nsplit

    x = x.astype(f32)
    xm = x.astype(matmul_dtype)
    if Bp != B:
        # zero rows are exact no-ops for x^T x and are sliced off the output
        xm = jnp.concatenate([xm, jnp.zeros((Bp - B, E), matmul_dtype)], axis=0)

    def resident(a):
        nd = a.ndim
        # invariant index_map + single buffer: no wasted 2x VMEM for weights
        return pl.BlockSpec(a.shape, lambda *_: (0,) * nd,
                            pipeline_mode=pl.Buffered(1))

    def vmem_limit(need):
        return int(min(budget, max(need, 32 << 20)))

    # ---- pass 1: Gram statistic x^T x, split across TensorCores ----
    need1 = (2 * batch_tile * E * mm_bytes + 2 * E * E * 4
             + 4 * batch_tile * E * 4 + (16 << 20))
    gram_parts = pl.pallas_call(
        gram_kernel,
        out_shape=jax.ShapeDtypeStruct((nsplit, E, E), f32),
        grid_spec=pltpu.PrefetchScalarGridSpec(
            num_scalar_prefetch=0,
            grid=(nsplit, nt_in),
            in_specs=[pl.BlockSpec((batch_tile, E),
                                   lambda s, i: (s * nt_in + i, 0))],
            out_specs=pl.BlockSpec((1, E, E), lambda s, i: (s, 0, 0)),
        ),
        compiler_params=pltpu.CompilerParams(
            dimension_semantics=("parallel", "arbitrary"),
            vmem_limit_bytes=vmem_limit(need1),
        ),
        cost_estimate=pl.CostEstimate(
            flops=int(2 * Bp * E * E), transcendentals=0,
            bytes_accessed=int(Bp * E * mm_bytes + nsplit * E * E * 4)),
    )(xm)

    # ---- tiny (E,E) finalization + Wq/Wo fold in plain XLA (f32) ----
    with jax.default_matmul_precision("highest"):
        gram = jnp.sum(gram_parts, axis=0)                                  # (E, E)
        ktv = params["wk"].astype(f32).T @ gram @ params["wv"].astype(f32)  # K^T V
        m = ktv[0:head_dim, 0:head_dim]
        for h in range(1, num_heads):
            lo = h * head_dim
            m = m + ktv[lo:lo + head_dim, lo:lo + head_dim]
        m = m * (1.0 / math.sqrt(head_dim))
        mbig = jnp.kron(jnp.eye(num_heads, dtype=f32), m)                   # blockdiag
        w_attn = params["wq"].astype(f32) @ mbig @ params["wo"].astype(f32)

    w_attn = w_attn.astype(matmul_dtype)
    w1 = params["w1"].astype(matmul_dtype)
    w2 = params["w2"].astype(matmul_dtype)
    g1 = jnp.reshape(params["g1"].astype(f32), (1, E))
    b1 = jnp.reshape(params["b1"].astype(f32), (1, E))
    g2 = jnp.reshape(params["g2"].astype(f32), (1, E))
    b2 = jnp.reshape(params["b2"].astype(f32), (1, E))

    # ---- pass 2: batch-tiled transformer block, weights resident, parallel ----
    block_args = (xm, w_attn, w1, w2, g1, b1, g2, b2)
    weight_bytes = (E * E + 4 * E * E) * mm_bytes + 4 * E * 4
    out = pl.pallas_call(
        self_block_kernel,
        out_shape=jax.ShapeDtypeStruct((Bp, E), f32),
        grid_spec=pltpu.PrefetchScalarGridSpec(
            num_scalar_prefetch=0,
            grid=(nt,),
            in_specs=[pl.BlockSpec((batch_tile, E), lambda i: (i, 0))]
                     + [resident(a) for a in block_args[1:]],
            out_specs=pl.BlockSpec((batch_tile, E), lambda i: (i, 0)),
        ),
        compiler_params=pltpu.CompilerParams(
            dimension_semantics=("parallel",),
            vmem_limit_bytes=vmem_limit(pass2_need(batch_tile)),
        ),
        cost_estimate=pl.CostEstimate(
            flops=int(10 * Bp * E * E), transcendentals=int(2 * Bp),
            bytes_accessed=int(Bp * E * (mm_bytes + 4) + weight_bytes)),
    )(*block_args)

    return out[:B] if Bp != B else out


def self_block_reference(x, p, num_heads):
    """Pure-JAX mirror of the PyTorch forward (eval mode), f32 matmuls."""
    B, E = x.shape
    with jax.default_matmul_precision("highest"):
        q, k, v = x @ p["wq"], x @ p["wk"], x @ p["wv"]

        def t_qkv(z):
            return z.reshape(B, num_heads, -1).reshape(B * num_heads, -1)

        qr, kr, vr = t_qkv(q), t_qkv(k), t_qkv(v)
        d = qr.shape[-1]
        s = (qr @ kr.T) / math.sqrt(d)            # (B*H, B*H), no softmax
        o = s @ vr
        oc = o.reshape(B, num_heads, d).reshape(B, E)
        attn = oc @ p["wo"]
        y = _layer_norm(attn + x, p["g1"], p["b1"])
        ffn = jnp.maximum(y @ p["w1"], 0.0) @ p["w2"]
        return _layer_norm(ffn + y, p["g2"], p["b2"])


if __name__ == "__main__":
    # Small but lane-dense demo shapes: E is a multiple of 128 lanes; batch_tile
    # 128 gives a 2-tile grid exercising the reduction + dual-TC split paths.
    B, E, H = 256, 128, 4        # head_dim = 32

    key = jax.random.PRNGKey(0)
    ks = jax.random.split(key, 11)

    def lin(k, fan_in, fan_out):
        return jax.random.normal(k, (fan_in, fan_out), jnp.float32) / math.sqrt(fan_in)

    params = {
        "wq": lin(ks[0], E, E),
        "wk": lin(ks[1], E, E),
        "wv": lin(ks[2], E, E),
        "wo": lin(ks[3], E, E),
        "w1": lin(ks[4], E, 2 * E),
        "w2": lin(ks[5], 2 * E, E),
        "g1": 1.0 + 0.1 * jax.random.normal(ks[6], (1, E), jnp.float32),
        "b1": 0.1 * jax.random.normal(ks[7], (1, E), jnp.float32),
        "g2": 1.0 + 0.1 * jax.random.normal(ks[8], (1, E), jnp.float32),
        "b2": 0.1 * jax.random.normal(ks[9], (1, E), jnp.float32),
    }
    x = jax.random.normal(ks[10], (B, E), jnp.float32)

    ref = jax.block_until_ready(self_block_reference(x, params, H))

    # f32 MXU path: tight check that the kernel structure / reassociations
    # (Gram reduction, Wq@Mbig@Wo fold) are exact up to f32 rounding order.
    out_f32 = jax.block_until_ready(
        self_block(x, params, H, batch_tile=128, matmul_dtype=jnp.float32))
    np.testing.assert_allclose(np.asarray(out_f32), np.asarray(ref),
                               rtol=2e-3, atol=2e-3)

    # bf16 MXU path (production default): looser tolerance for bf16 operands
    # (f32 accumulation; errors post-LayerNorm are ~1e-2 typical).
    out_bf16 = jax.block_until_ready(self_block(x, params, H, batch_tile=128))
    np.testing.assert_allclose(np.asarray(out_bf16), np.asarray(ref),
                               rtol=1e-1, atol=1e-1)

    print("KERNEL_OK")
</pallas_src>

<mosaic_0001>
module attributes {stable_mosaic.version = 11 : i64} {
  func.func @gram_kernel(%arg0: i32, %arg1: i32, %arg2: memref<128x128xf32, #tpu.memory_space<vmem>>, %arg3: memref<1x128x128xf32, #tpu.memory_space<vmem>>) attributes {dimension_semantics = [#tpu.dimension_semantics<parallel>, #tpu.dimension_semantics<arbitrary>], iteration_bounds = array<i64: 2, 1>, scalar_prefetch = 0 : i64, scratch_operands = 0 : i64, tpu.core_type = #tpu.core_type<tc>, window_params = [{transform_indices = @transform_0, window_bounds = array<i64: 128, 128>}, {transform_indices = @transform_1, window_bounds = array<i64: 1, 128, 128>}]} {
    %c0_i32 = arith.constant 0 : i32
    %0 = arith.cmpi eq, %arg1, %c0_i32 : i32
    %1 = arith.extui %0 : i1 to i32
    %c0_i32_0 = arith.constant 0 : i32
    %2 = arith.cmpi ne, %1, %c0_i32_0 : i32
    scf.if %2 {
      %cst_8 = arith.constant 0.000000e+00 : f32
      %9 = vector.broadcast %cst_8 : f32 to vector<1x128x128xf32>
      %c0_9 = arith.constant 0 : index
      %c0_10 = arith.constant 0 : index
      %c0_11 = arith.constant 0 : index
      %10 = vector.load %arg3[%c0_9, %c0_10, %c0_11] : memref<1x128x128xf32, #tpu.memory_space<vmem>>, vector<1x128x128xf32>
      tpu.vector_store %arg3[%c0_9, %c0_10, %c0_11], %9 {strides = array<i32>} : memref<1x128x128xf32, #tpu.memory_space<vmem>>, vector<1x128x128xf32>,
    } else {
    }
    %c0 = arith.constant 0 : index
    %c0_1 = arith.constant 0 : index
    %3 = vector.load %arg2[%c0, %c0_1] : memref<128x128xf32, #tpu.memory_space<vmem>>, vector<128x128xf32>
    %cst = arith.constant dense<0.000000e+00> : vector<128x128xf32>
    %4 = tpu.matmul %3, %3, %cst {dimension_numbers = #tpu.dot_dimension_numbers<[0], [0], [1], [1], [0, 1, 1, 1], [], []>} : vector<128x128xf32>, vector<128x128xf32>, vector<128x128xf32> -> vector<128x128xf32>
    %c0_2 = arith.constant 0 : index
    %c0_3 = arith.constant 0 : index
    %c0_4 = arith.constant 0 : index
    %5 = vector.load %arg3[%c0_2, %c0_3, %c0_4] : memref<1x128x128xf32, #tpu.memory_space<vmem>>, vector<1x128x128xf32>
    %6 = vector.shape_cast %4 : vector<128x128xf32> to vector<1x128x128xf32>
    %7 = arith.addf %5, %6 : vector<1x128x128xf32>
    %c0_5 = arith.constant 0 : index
    %c0_6 = arith.constant 0 : index
    %c0_7 = arith.constant 0 : index
    %8 = vector.load %arg3[%c0_5, %c0_6, %c0_7] : memref<1x128x128xf32, #tpu.memory_space<vmem>>, vector<1x128x128xf32>
    tpu.vector_store %arg3[%c0_5, %c0_6, %c0_7], %7 {strides = array<i32>} : memref<1x128x128xf32, #tpu.memory_space<vmem>>, vector<1x128x128xf32>,
    return
  }
  func.func @transform_0(%arg0: i32, %arg1: i32) -> (i32, i32) {
    %c1_i32 = arith.constant 1 : i32
    %0 = arith.muli %arg0, %c1_i32 : i32
    %1 = arith.addi %0, %arg1 : i32
    %c0_i32 = arith.constant 0 : i32
    %c0_i32_0 = arith.constant 0 : i32
    return %1, %c0_i32 : i32, i32
  }
  func.func @transform_1(%arg0: i32, %arg1: i32) -> (i32, i32, i32) {
    %c0_i32 = arith.constant 0 : i32
    %c0_i32_0 = arith.constant 0 : i32
    %c0_i32_1 = arith.constant 0 : i32
    return %arg0, %c0_i32, %c0_i32_0 : i32, i32, i32
  }
}

</mosaic_0001>

<llo_original>
// kernel: tpu_custom_call.1
$region0: #{tpu_custom_call.1}
  #allocation0 [shape = 'u32[]', space=smem, size = 0x4, offset = 0x4, fixed_abs, tag = 'smem constant byte address 0x4 - core index']
  #allocation1 [shape = 'u32[72,128]{1,0:T(1,128)}', space=vmem, size = 0x9000, scoped, tag = 'internal scratch']
  %s0 = inlined_call_operand.hbm [shape: f32[256,128], index: 0, kind: input, shape index: {}]
  %s1 = inlined_call_operand.hbm [shape: f32[2,128,128], index: 1, kind: output, shape index: {}]
  %s2 = sld [smem:[#allocation0]]
  $region45: #{tpu_custom_call.1} parent=0
    _
  %s4 = ssub.s32 1, %s2
  %s5 = scalar_select 0, %s4, %s2
  $region1: #{tpu_custom_call.1} parent=0
    #allocation2 [shape = 'u8[131072]{0}', space=vmem, size = 0x20000, scoped, tag = 'input window, operand 0']
    #allocation3 [shape = 's32[2]{0}', space=sflag, size = 0x8, scoped, tag = 'scoped memory for tpu_custom_call.1']
    #allocation4 [shape = 's32[2]{0}', space=sflag, size = 0x8, scoped, tag = 'scoped memory for tpu_custom_call.1']
    #allocation5 [shape = 'u8[131072]{0}', space=vmem, size = 0x20000, scoped, tag = 'output window, operand 0']
    %6 = vsyncpa [#allocation3], 0
    %s7 = scalar_lea.sflag [#allocation3], 1
    %8 = vsyncpa %s7, 0
    %9 = vsyncpa [#allocation4], 0
    %s10 = scalar_lea.sflag [#allocation4], 1
    %11 = vsyncpa %s10, 0
    loop: start=0, step=1, limit=4
    $region2: #{tpu_custom_call.1} parent=1 // loop_pre_header
      _
    $region3: #{tpu_custom_call.1} parent=1 // loop_header
      %s13 = sphi 0, %s17
      %p14 = scmp.ge.s32.totalorder %s13, 4
      %s20 = sphi 0, %s32
      %s21 = sphi 0, %s28
      %s22 = sphi 0, %s20
      %s23 = sphi 0, %s21
      %s24 = sphi 0, %s22
      %s25 = sphi 0, %s23
      %s37 = sphi 0, %s39
      %s40 = sphi 0, %s37
      %s41 = sphi 0, %s40
      %s57 = sphi 0, %s41
      %s63 = sphi 0, %s65
      %s66 = sphi 0, %s63
      %s67 = sphi 0, %s66
      %s83 = sphi 0, %s67
    $region4: #{tpu_custom_call.1} parent=1 // loop_header_branch
      %16 = sbr.rel (%p14) target = $region8
    $region5: #{tpu_custom_call.1} parent=1 // loop_body
      %s18 = ssub.s32 %s13, 1
      %s19 = ssub.s32 %s13, 2
      %s26 = sadd.s32 1, %s21
      %p27 = scmp.ge.s32.totalorder %s26, 1
      %s28 = scalar_select %p27, 0, %s26
      %s29 = sadd.s32 1, %s20
      %s30 = scalar_select %p27, %s29, %s20
      %p31 = scmp.ge.s32.totalorder %s30, 2
      %s32 = scalar_select %p31, 0, %s30
      %s33 = sadd.s32 %s20, %s21
      %s34 = sadd.s32 %s32, %s28
      %s35 = ssub.s32 %s33, %s34
      %p36 = scmp.eq.s32.totalorder %s35, 0
      %s38 = sadd.s32 %s37, 1
      %s39 = scalar_select %p36, %s37, %s38
      %p42 = pneg %p36
      %p43 = scmp.eq.s32.totalorder %s13, 1
      %p44 = por %p42, %p43
      %p45 = scmp.ne.s32.totalorder %s37, %s40
      %p46 = scmp.eq.s32.totalorder %s13, 0
      %p47 = por %p45, %p46
      %p48 = scmp.ne.s32.totalorder %s37, %s40
      %p49 = scmp.eq.s32.totalorder %s18, 1
      %p50 = por %p48, %p49
      %p51 = scmp.ne.s32.totalorder %s40, %s41
      %p52 = scmp.eq.s32.totalorder %s18, 0
      %p53 = por %p51, %p52
      %p54 = scmp.ne.s32.totalorder %s40, %s41
      %p55 = scmp.eq.s32.totalorder %s19, 1
      %p56 = por %p54, %p55
      %p58 = scmp.ne.s32.totalorder %s41, %s57
      %p59 = scmp.eq.s32.totalorder %s19, 0
      %p60 = por %p58, %p59
      %s61 = ssub.s32 %s20, %s32
      %p62 = scmp.eq.s32.totalorder %s61, 0
      %s64 = sadd.s32 %s63, 1
      %s65 = scalar_select %p62, %s63, %s64
      %p68 = pneg %p62
      %p69 = scmp.eq.s32.totalorder %s13, 1
      %p70 = por %p68, %p69
      %p71 = scmp.ne.s32.totalorder %s63, %s66
      %p72 = scmp.eq.s32.totalorder %s13, 0
      %p73 = por %p71, %p72
      %p74 = scmp.ne.s32.totalorder %s63, %s66
      %p75 = scmp.eq.s32.totalorder %s18, 1
      %p76 = por %p74, %p75
      %p77 = scmp.ne.s32.totalorder %s66, %s67
      %p78 = scmp.eq.s32.totalorder %s18, 0
      %p79 = por %p77, %p78
      %p80 = scmp.ne.s32.totalorder %s66, %s67
      %p81 = scmp.eq.s32.totalorder %s19, 1
      %p82 = por %p80, %p81
      %p84 = scmp.ne.s32.totalorder %s67, %s83
      %p85 = scmp.eq.s32.totalorder %s19, 0
      %p86 = por %p84, %p85
      %p87 = scmp.le.s32.totalorder 1, %s13
      %p88 = scmp.lt.s32.totalorder %s13, 3
      %p89 = pnand %p87, %p88
      %p90 = pneg %p89
      // Predicated region
      $region9: #{tpu_custom_call.1} parent=5 // pred_check
        _
      $region10: #{tpu_custom_call.1} parent=5 // pred_check_branch
        %92 = sbr.rel (%p89) target = $region12
      $region11: #{tpu_custom_call.1} parent=5 // pred_region
        %s93 = ssub.s32 %s13, 1
      $region12: #{tpu_custom_call.1} parent=5 // pred_fallthru
        _
      %p94 = scmp.lt.s32.totalorder %s13, 2
      // Predicated region
      $region13: #{tpu_custom_call.1} parent=5 // pred_check
        %p95 = pneg %p94
      $region14: #{tpu_custom_call.1} parent=5 // pred_check_branch
        %97 = sbr.rel (%p95) target = $region16
      $region15: #{tpu_custom_call.1} parent=5 // pred_region
        // Predicated region
        $region17: #{tpu_custom_call.1} parent=15 // pred_check
          %p98 = pneg %p47
        $region18: #{tpu_custom_call.1} parent=15 // pred_check_branch
          %100 = sbr.rel (%p98) target = $region20
        $region19: #{tpu_custom_call.1} parent=15 // pred_region
          %s101 = sand.u32 %s37, 1
          %s102 = scalar_lea.sflag [#allocation3], %s101
          %s103 = sand.u32 %s37, 1
          %s104 = smul.addr %s103, 128
          %s105 = scalar_lea.vmem [#allocation2], %s104
          %s106 = sadd.s32 %s20, %s21
          %s107 = smul.u32 16, %s106
          %109 = vsyncadd %s102, 0
          %s110 = smul.addr %s107, 8
          %s111 = scalar_lea.hbm %s0, %s110
          %s112 = sshll.u32 %s111, 4
          %s113 = int_to_ptr.hbm [resolvable:$true] %s112
          %s114 = sshll.u32 %s105, 4
          %s115 = int_to_ptr.vmem [resolvable:$true] %s114
          %120 = dma.hbm_to_vmem [thread:$0]  %s113, 2048, %s115, %s102, 128, 128, 8
        $region20: #{tpu_custom_call.1} parent=15 // pred_fallthru
          _
      $region16: #{tpu_custom_call.1} parent=5 // pred_fallthru
        _
      %p121 = scmp.le.s32.totalorder 1, %s13
      %p122 = scmp.lt.s32.totalorder %s13, 3
      %p123 = pnand %p121, %p122
      %p124 = pneg %p123
      // Predicated region
      $region21: #{tpu_custom_call.1} parent=5 // pred_check
        _
      $region22: #{tpu_custom_call.1} parent=5 // pred_check_branch
        %126 = sbr.rel (%p123) target = $region24
      $region23: #{tpu_custom_call.1} parent=5 // pred_region
        %s127 = ssub.s32 %s13, 1
        %s128 = sand.u32 %s40, 1
        %s129 = scalar_lea.sflag [#allocation3], %s128
        %s130 = sand.u32 %s40, 1
        %s131 = smul.addr %s130, 128
        %s132 = scalar_lea.vmem [#allocation2], %s131
        // Predicated region
        $region25: #{tpu_custom_call.1} parent=23 // pred_check
          %p133 = pneg %p53
        $region26: #{tpu_custom_call.1} parent=23 // pred_check_branch
          %135 = sbr.rel (%p133) target = $region28
        $region27: #{tpu_custom_call.1} parent=23 // pred_region
          %137 = dma.done %s129, 2048
        $region28: #{tpu_custom_call.1} parent=23 // pred_fallthru
          _
        %s138 = sand.u32 %s40, 1
        %s139 = scalar_lea.sflag [#allocation3], %s138
        %s140 = sand.u32 %s40, 1
        %s141 = smul.addr %s140, 128
        %s142 = scalar_lea.vmem [#allocation2], %s141
        %p143 = pneg %p53
        %p144 = pneg %p50
        %p145 = pneg %p79
        %p146 = pneg %p76
        %s147 = sand.u32 %s66, 1
        %s148 = scalar_lea.sflag [#allocation4], %s147
        %s149 = sand.u32 %s66, 1
        %s150 = smul.addr %s149, 128
        %s151 = scalar_lea.vmem [#allocation5], %s150
        %s152 = sadd.s32 %s22, %s23
        %s153 = smul.u32 16, %s152
        %p154 = scmp.eq.s32.totalorder %s23, 0
        // Predicated region
        $region29: #{tpu_custom_call.1} parent=23 // pred_check
          %p155 = pneg %p154
        $region30: #{tpu_custom_call.1} parent=23 // pred_check_branch
          %157 = sbr.rel (%p155) target = $region32
        $region31: #{tpu_custom_call.1} parent=23 // pred_region
          %158 = vst [vmem:[%s151] sm:$0xff] 0.0
          %159 = vst [vmem:[%s151 + $0x8] sm:$0xff] 0.0
          %160 = vst [vmem:[%s151 + $0x10] sm:$0xff] 0.0
          %161 = vst [vmem:[%s151 + $0x18] sm:$0xff] 0.0
          %162 = vst [vmem:[%s151 + $0x20] sm:$0xff] 0.0
          %163 = vst [vmem:[%s151 + $0x28] sm:$0xff] 0.0
          %164 = vst [vmem:[%s151 + $0x30] sm:$0xff] 0.0
          %165 = vst [vmem:[%s151 + $0x38] sm:$0xff] 0.0
          %166 = vst [vmem:[%s151 + $0x40] sm:$0xff] 0.0
          %167 = vst [vmem:[%s151 + $0x48] sm:$0xff] 0.0
          %168 = vst [vmem:[%s151 + $0x50] sm:$0xff] 0.0
          %169 = vst [vmem:[%s151 + $0x58] sm:$0xff] 0.0
          %170 = vst [vmem:[%s151 + $0x60] sm:$0xff] 0.0
          %171 = vst [vmem:[%s151 + $0x68] sm:$0xff] 0.0
          %172 = vst [vmem:[%s151 + $0x70] sm:$0xff] 0.0
          %173 = vst [vmem:[%s151 + $0x78] sm:$0xff] 0.0
        $region32: #{tpu_custom_call.1} parent=23 // pred_fallthru
          _
        %v174 = vld [vmem:[%s132] sm:$0xff]
        %v175 = vld [vmem:[%s132 + $0x8] sm:$0xff]
        %v176 = vld [vmem:[%s132 + $0x10] sm:$0xff]
        %v177 = vld [vmem:[%s132 + $0x18] sm:$0xff]
        %v178 = vld [vmem:[%s132 + $0x20] sm:$0xff]
        %v179 = vld [vmem:[%s132 + $0x28] sm:$0xff]
        %v180 = vld [vmem:[%s132 + $0x30] sm:$0xff]
        %v181 = vld [vmem:[%s132 + $0x38] sm:$0xff]
        %v182 = vld [vmem:[%s132 + $0x40] sm:$0xff]
        %v183 = vld [vmem:[%s132 + $0x48] sm:$0xff]
        %v184 = vld [vmem:[%s132 + $0x50] sm:$0xff]
        %v185 = vld [vmem:[%s132 + $0x58] sm:$0xff]
        %v186 = vld [vmem:[%s132 + $0x60] sm:$0xff]
        %v187 = vld [vmem:[%s132 + $0x68] sm:$0xff]
        %v188 = vld [vmem:[%s132 + $0x70] sm:$0xff]
        %v189 = vld [vmem:[%s132 + $0x78] sm:$0xff]
        %190 = vxpose.xlu0.b32.start [1/16] %v174, 128
        %191 = vxpose.xlu0.b32.cont [2/16] %v175, 128
        %192 = vxpose.xlu0.b32.cont [3/16] %v176, 128
        %193 = vxpose.xlu0.b32.cont [4/16] %v177, 128
        %194 = vxpose.xlu0.b32.cont [5/16] %v178, 128
        %195 = vxpose.xlu0.b32.cont [6/16] %v179, 128
        %196 = vxpose.xlu0.b32.cont [7/16] %v180, 128
        %197 = vxpose.xlu0.b32.cont [8/16] %v181, 128
        %198 = vxpose.xlu0.b32.cont [9/16] %v182, 128
        %199 = vxpose.xlu0.b32.cont [10/16] %v183, 128
        %200 = vxpose.xlu0.b32.cont [11/16] %v184, 128
        %201 = vxpose.xlu0.b32.cont [12/16] %v185, 128
        %202 = vxpose.xlu0.b32.cont [13/16] %v186, 128
        %203 = vxpose.xlu0.b32.cont [14/16] %v187, 128
        %204 = vxpose.xlu0.b32.cont [15/16] %v188, 128
        %205 = vxpose.xlu0.b32.end [16/16] %v189, 128
        %v206 = vpop.trf.xlu0
        %v207 = vpop.trf.xlu0
        %v208 = vpop.trf.xlu0
        %v209 = vpop.trf.xlu0
        %v210 = vpop.trf.xlu0
        %v211 = vpop.trf.xlu0
        %v212 = vpop.trf.xlu0
        %v213 = vpop.trf.xlu0
        %v214 = vpop.trf.xlu0
        %v215 = vpop.trf.xlu0
        %v216 = vpop.trf.xlu0
        %v217 = vpop.trf.xlu0
        %v218 = vpop.trf.xlu0
        %v219 = vpop.trf.xlu0
        %v220 = vpop.trf.xlu0
        %v221 = vpop.trf.xlu0
        %222 = vmatpush.msra.mxu0 %v189
        %223 = vmatpush.msra.mxu0 %v188
        %224 = vmatpush.msra.mxu0 %v187
        %225 = vmatpush.msra.mxu0 %v186
        %226 = vmatpush.msra.mxu0 %v185
        %227 = vmatpush.msra.mxu0 %v184
        %228 = vmatpush.msra.mxu0 %v183
        %229 = vmatpush.msra.mxu0 %v182
        %230 = vmatpush.msra.mxu0 %v181
        %231 = vmatpush.msra.mxu0 %v180
        %232 = vmatpush.msra.mxu0 %v179
        %233 = vmatpush.msra.mxu0 %v178
        %234 = vmatpush.msra.mxu0 %v177
        %235 = vmatpush.msra.mxu0 %v176
        %236 = vmatpush.msra.mxu0 %v175
        %237 = vmatpush.msra.mxu0 %v174
        %238 = vmatmul.f32.gmra.mxu0 %v206
        %v239 = vpop.f32.mrf.mxu0
        %v240 = vadd.f32 0.0, %v239
        %241 = vmatmul.f32.gmra.mxu0 %v207
        %v242 = vpop.f32.mrf.mxu0
        %v243 = vadd.f32 0.0, %v242
        %244 = vmatmul.f32.gmra.mxu0 %v208
        %v245 = vpop.f32.mrf.mxu0
        %v246 = vadd.f32 0.0, %v245
        %247 = vmatmul.f32.gmra.mxu0 %v209
        %v248 = vpop.f32.mrf.mxu0
        %v249 = vadd.f32 0.0, %v248
        %250 = vmatmul.f32.gmra.mxu0 %v210
        %v251 = vpop.f32.mrf.mxu0
        %v252 = vadd.f32 0.0, %v251
        %253 = vmatmul.f32.gmra.mxu0 %v211
        %v254 = vpop.f32.mrf.mxu0
        %v255 = vadd.f32 0.0, %v254
        %256 = vmatmul.f32.gmra.mxu0 %v212
        %v257 = vpop.f32.mrf.mxu0
        %v258 = vadd.f32 0.0, %v257
        %259 = vmatmul.f32.gmra.mxu0 %v213
        %v260 = vpop.f32.mrf.mxu0
        %v261 = vadd.f32 0.0, %v260
        %262 = vmatmul.f32.gmra.mxu0 %v214
        %v263 = vpop.f32.mrf.mxu0
        %v264 = vadd.f32 0.0, %v263
        %265 = vmatmul.f32.gmra.mxu0 %v215
        %v266 = vpop.f32.mrf.mxu0
        %v267 = vadd.f32 0.0, %v266
        %268 = vmatmul.f32.gmra.mxu0 %v216
        %v269 = vpop.f32.mrf.mxu0
        %v270 = vadd.f32 0.0, %v269
        %271 = vmatmul.f32.gmra.mxu0 %v217
        %v272 = vpop.f32.mrf.mxu0
        %v273 = vadd.f32 0.0, %v272
        %274 = vmatmul.f32.gmra.mxu0 %v218
        %v275 = vpop.f32.mrf.mxu0
        %v276 = vadd.f32 0.0, %v275
        %277 = vmatmul.f32.gmra.mxu0 %v219
        %v278 = vpop.f32.mrf.mxu0
        %v279 = vadd.f32 0.0, %v278
        %280 = vmatmul.f32.gmra.mxu0 %v220
        %v281 = vpop.f32.mrf.mxu0
        %v282 = vadd.f32 0.0, %v281
        %283 = vmatmul.f32.gmra.mxu0 %v221
        %v284 = vpop.f32.mrf.mxu0
        %v285 = vadd.f32 0.0, %v284
        %286 = vdwg.mxu0
        %v287 = vld [vmem:[%s151] sm:$0xff]
        %v288 = vld [vmem:[%s151 + $0x8] sm:$0xff]
        %v289 = vld [vmem:[%s151 + $0x10] sm:$0xff]
        %v290 = vld [vmem:[%s151 + $0x18] sm:$0xff]
        %v291 = vld [vmem:[%s151 + $0x20] sm:$0xff]
        %v292 = vld [vmem:[%s151 + $0x28] sm:$0xff]
        %v293 = vld [vmem:[%s151 + $0x30] sm:$0xff]
        %v294 = vld [vmem:[%s151 + $0x38] sm:$0xff]
        %v295 = vld [vmem:[%s151 + $0x40] sm:$0xff]
        %v296 = vld [vmem:[%s151 + $0x48] sm:$0xff]
        %v297 = vld [vmem:[%s151 + $0x50] sm:$0xff]
        %v298 = vld [vmem:[%s151 + $0x58] sm:$0xff]
        %v299 = vld [vmem:[%s151 + $0x60] sm:$0xff]
        %v300 = vld [vmem:[%s151 + $0x68] sm:$0xff]
        %v301 = vld [vmem:[%s151 + $0x70] sm:$0xff]
        %v302 = vld [vmem:[%s151 + $0x78] sm:$0xff]
        %v303 = vadd.f32 %v287, %v240
        %v304 = vadd.f32 %v288, %v243
        %v305 = vadd.f32 %v289, %v246
        %v306 = vadd.f32 %v290, %v249
        %v307 = vadd.f32 %v291, %v252
        %v308 = vadd.f32 %v292, %v255
        %v309 = vadd.f32 %v293, %v258
        %v310 = vadd.f32 %v294, %v261
        %v311 = vadd.f32 %v295, %v264
        %v312 = vadd.f32 %v296, %v267
        %v313 = vadd.f32 %v297, %v270
        %v314 = vadd.f32 %v298, %v273
        %v315 = vadd.f32 %v299, %v276
        %v316 = vadd.f32 %v300, %v279
        %v317 = vadd.f32 %v301, %v282
        %v318 = vadd.f32 %v302, %v285
        %319 = vst [vmem:[%s151] sm:$0xff] %v303
        %320 = vst [vmem:[%s151 + $0x8] sm:$0xff] %v304
        %321 = vst [vmem:[%s151 + $0x10] sm:$0xff] %v305
        %322 = vst [vmem:[%s151 + $0x18] sm:$0xff] %v306
        %323 = vst [vmem:[%s151 + $0x20] sm:$0xff] %v307
        %324 = vst [vmem:[%s151 + $0x28] sm:$0xff] %v308
        %325 = vst [vmem:[%s151 + $0x30] sm:$0xff] %v309
        %326 = vst [vmem:[%s151 + $0x38] sm:$0xff] %v310
        %327 = vst [vmem:[%s151 + $0x40] sm:$0xff] %v311
        %328 = vst [vmem:[%s151 + $0x48] sm:$0xff] %v312
        %329 = vst [vmem:[%s151 + $0x50] sm:$0xff] %v313
        %330 = vst [vmem:[%s151 + $0x58] sm:$0xff] %v314
        %331 = vst [vmem:[%s151 + $0x60] sm:$0xff] %v315
        %332 = vst [vmem:[%s151 + $0x68] sm:$0xff] %v316
        %333 = vst [vmem:[%s151 + $0x70] sm:$0xff] %v317
        %334 = vst [vmem:[%s151 + $0x78] sm:$0xff] %v318
        %s335 = sand.u32 %s66, 1
        %s336 = scalar_lea.sflag [#allocation4], %s335
        %s337 = sand.u32 %s66, 1
        %s338 = smul.addr %s337, 128
        %s339 = scalar_lea.vmem [#allocation5], %s338
        // Predicated region
        $region33: #{tpu_custom_call.1} parent=23 // pred_check
          %p340 = pneg %p76
        $region34: #{tpu_custom_call.1} parent=23 // pred_check_branch
          %342 = sbr.rel (%p340) target = $region36
        $region35: #{tpu_custom_call.1} parent=23 // pred_region
          %344 = vsyncadd %s336, 0
          %s345 = smul.addr %s22, 16
          %s346 = smul.addr %s345, 8
          %s347 = scalar_lea.hbm %s1, %s346
          %s348 = sshll.u32 %s339, 4
          %s349 = int_to_ptr.vmem [resolvable:$true] %s348
          %s350 = sshll.u32 %s347, 4
          %s351 = int_to_ptr.hbm [resolvable:$true] %s350
          %356 = dma.vmem_to_hbm [thread:$0]  %s349, 2048, %s351, %s336, 128, 128, 8
        $region36: #{tpu_custom_call.1} parent=23 // pred_fallthru
          _
      $region24: #{tpu_custom_call.1} parent=5 // pred_fallthru
        _
      %p357 = scmp.le.s32.totalorder 2, %s13
      // Predicated region
      $region37: #{tpu_custom_call.1} parent=5 // pred_check
        %p358 = pneg %p357
      $region38: #{tpu_custom_call.1} parent=5 // pred_check_branch
        %360 = sbr.rel (%p358) target = $region40
      $region39: #{tpu_custom_call.1} parent=5 // pred_region
        %s361 = ssub.s32 %s13, 2
        // Predicated region
        $region41: #{tpu_custom_call.1} parent=39 // pred_check
          %p362 = pneg %p82
        $region42: #{tpu_custom_call.1} parent=39 // pred_check_branch
          %364 = sbr.rel (%p362) target = $region44
        $region43: #{tpu_custom_call.1} parent=39 // pred_region
          %s365 = sand.u32 %s67, 1
          %s366 = scalar_lea.sflag [#allocation4], %s365
          %s367 = sand.u32 %s67, 1
          %s368 = smul.addr %s367, 128
          %s369 = scalar_lea.vmem [#allocation5], %s368
          %371 = dma.done %s366, 2048
        $region44: #{tpu_custom_call.1} parent=39 // pred_fallthru
          _
      $region40: #{tpu_custom_call.1} parent=5 // pred_fallthru
        _
    $region6: #{tpu_custom_call.1} parent=1 // loop_footer
      %s17 = sadd.s32 1, %s13
    $region7: #{tpu_custom_call.1} parent=1 // loop_footer_branch
      %12 = sbr.rel target = $region3
    $region8: #{tpu_custom_call.1} parent=1 // loop_exit
      _
    %372 = vsyncpa [#allocation3], 1
    %s373 = scalar_lea.sflag [#allocation3], 1
    %374 = vsyncpa %s373, 1
    %375 = vsyncpa [#allocation4], 1
    %s376 = scalar_lea.sflag [#allocation4], 1
    %377 = vsyncpa %s376, 1

</llo_original>
